<compile_context>
chip_gen: v7x
topology: tpu7x:2x2x1
jax: 0.10.0
libtpu: 0.0.40
codegen_flags: <defaults>
</compile_context>

<pallas_src>
import functools

import jax
import jax.numpy as jnp
from jax.experimental import pallas as pl
from jax.experimental.pallas import tpu as pltpu

INPUT_DIM = 2
HIDDEN_DIM = 10
OUTPUT_DIM = 1
H_PAD = 16          # hidden dim padded to a multiple of 8 (f32 sublane tile)

# Max lanes per grid step.  Live f32 intermediates are ~200-280 B/lane
# (z1/h1/z2/h2 at ~64 B/lane each + double-buffered x/out tiles), so 32K lanes
# is ~9 MiB of VMEM: safely under the scoped ceilings of v5e/v6e/v7x while
# amortizing the ~0.35us fixed per-grid-step overhead to <10% for large B.
MAX_BLOCK_LANES = 32 * 1024


def _round_up(n, m):
    return ((n + m - 1) // m) * m


def _cdiv(a, b):
    return -(-a // b)


def _num_tensorcores_per_chip():
    """v7x exposes two TensorCores per chip; v5e/v6e have a single one."""
    try:
        kind = jax.devices()[0].device_kind.lower()
        if "v7" in kind:
            return 2
    except Exception:
        pass
    return 1


def _sigmoid(x):
    # sigmoid(x) == 0.5 * (tanh(x/2) + 1): one EUP push per vreg instead of
    # an exp + reciprocal pair.
    return 0.5 * (jnp.tanh(0.5 * x) + 1.0)


def mlp_kernel(x_ref, w1_ref, b1_ref, w2_ref, b2_ref, w3_ref, b3_ref, o_ref):
    # x_ref : (INPUT_DIM, Bt)      batch dense on lanes
    # w1_ref: (H_PAD, INPUT_DIM)   b1_ref: (H_PAD, 1)
    # w2_ref: (H_PAD, H_PAD)       b2_ref: (H_PAD, 1)
    # w3_ref: (H_PAD, 1)           b3_ref: (1, 1)
    # o_ref : (OUTPUT_DIM, Bt)     lane-dense output
    x = x_ref[...]
    w1 = w1_ref[...]

    # ---- layer 1: Linear(2 -> 10) + ReLU.  K=2 -> two broadcast FMAs on the
    # VPU instead of a degenerate MXU push/pop on the critical path.
    z1 = b1_ref[...]                       # (H_PAD, 1), broadcasts over lanes
    for k in range(INPUT_DIM):             # static unroll (INPUT_DIM == 2)
        z1 = z1 + w1[:, k:k + 1] * x[k:k + 1, :]
    h1 = jnp.maximum(z1, 0.0)              # (H_PAD, Bt); padded rows stay 0

    # ---- layer 2: Linear(10 -> 10) + sigmoid.  Small MXU matmul; batch stays
    # lane-dense so the result tile is fully packed.  HIGHEST precision keeps
    # full-f32 MXU math (free at 16x16).
    z2 = jnp.dot(w2_ref[...], h1,
                 preferred_element_type=jnp.float32,
                 precision=jax.lax.Precision.HIGHEST)
    h2 = _sigmoid(z2 + b2_ref[...])        # (H_PAD, Bt)

    # ---- layer 3: Linear(10 -> 1) + sigmoid.  N=1 -> elementwise multiply +
    # sublane reduce (VPU + XLU), no degenerate MXU matmul.  Padded hidden rows
    # contribute 0 because the padded w3 entries are 0.
    z3 = jnp.sum(w3_ref[...] * h2, axis=0, keepdims=True) + b3_ref[...]
    o_ref[...] = _sigmoid(z3).astype(o_ref.dtype)


def _choose_block_batch(B, n_cores):
    """Pick the per-step lane count.

    * Small batches (< 256) -> a single 128-aligned tile (per-step overhead
      dominates; no point splitting, even on v7x).
    * Otherwise use as few steps as possible subject to the MAX_BLOCK_LANES
      VMEM-safe cap, rounded up to a multiple of the TensorCore count so both
      v7x cores get work; single-TC chips (v5e/v6e) are NOT forced to take
      extra steps.
    """
    if B < 256:
        n_steps = 1
    else:
        n_steps = max(n_cores, _cdiv(B, MAX_BLOCK_LANES))
        n_steps = n_cores * _cdiv(n_steps, n_cores)
    return _round_up(_cdiv(B, n_steps), 128)


@functools.partial(jax.jit, static_argnames=("block_batch",))
def mlp_forward(x, w1p, b1p, w2p, b2p, w3p, b3p, *, block_batch=None):
    """x: (B, INPUT_DIM) f32.  Params in kernel layout (see pack_params)."""
    B = x.shape[0]

    if block_batch is None:
        block_batch = _choose_block_batch(B, _num_tensorcores_per_chip())
    block_batch = _round_up(block_batch, 128)
    b_pad = _round_up(B, block_batch)

    # Batch rides the lane axis: (B, 2) -> (2, b_pad), zero padded.  Padded
    # lanes compute sigmoid(bias-only) garbage inside the kernel; it is sliced
    # off below and never feeds a reduction.
    xt = jnp.pad(x.T, ((0, 0), (0, b_pad - B)))

    grid = (b_pad // block_batch,)

    def full(a):
        nd = a.ndim
        return pl.BlockSpec(a.shape, lambda i: (0,) * nd)

    out_t = pl.pallas_call(
        mlp_kernel,
        out_shape=jax.ShapeDtypeStruct((OUTPUT_DIM, b_pad), jnp.float32),
        grid=grid,
        in_specs=[
            pl.BlockSpec((INPUT_DIM, block_batch), lambda i: (0, i)),  # x tile
            full(w1p), full(b1p),
            full(w2p), full(b2p),
            full(w3p), full(b3p),
        ],
        out_specs=pl.BlockSpec((OUTPUT_DIM, block_batch), lambda i: (0, i)),
        compiler_params=pltpu.CompilerParams(
            dimension_semantics=("parallel",),
            # Raise v5e's 16 MiB scoped default; ~9 MiB peak at 32K lanes so
            # 32 MiB leaves headroom everywhere (v7x physical is 64 MiB).
            vmem_limit_bytes=32 << 20),
    )(xt, w1p, b1p, w2p, b2p, w3p, b3p)

    return out_t[:, :B].T          # back to (B, OUTPUT_DIM)


def init_params(key):
    """Torch-layout params: W as (out_features, in_features), b as (out_features,)."""
    k1, k2, k3, k4, k5, k6 = jax.random.split(key, 6)

    def linear_init(kw, kb, fan_in, fan_out):
        # torch Linear default: U(-1/sqrt(fan_in), 1/sqrt(fan_in))
        bound = 1.0 / (fan_in ** 0.5)
        w = jax.random.uniform(kw, (fan_out, fan_in), jnp.float32, -bound, bound)
        b = jax.random.uniform(kb, (fan_out,), jnp.float32, -bound, bound)
        return w, b

    w1, b1 = linear_init(k1, k2, INPUT_DIM, HIDDEN_DIM)
    w2, b2 = linear_init(k3, k4, HIDDEN_DIM, HIDDEN_DIM)
    w3, b3 = linear_init(k5, k6, HIDDEN_DIM, OUTPUT_DIM)
    return w1, b1, w2, b2, w3, b3


def pack_params(w1, b1, w2, b2, w3, b3):
    """Zero-pad to sublane-aligned kernel layout (hidden -> H_PAD).

    Zero padding keeps the math exact: padded hidden rows of h1 are
    relu(0) = 0 and the padded entries of w2/w3 are 0, so padding never
    contributes to the output.
    """
    w1p = jnp.zeros((H_PAD, INPUT_DIM), jnp.float32).at[:HIDDEN_DIM, :].set(w1)
    b1p = jnp.zeros((H_PAD, 1), jnp.float32).at[:HIDDEN_DIM, 0].set(b1)
    w2p = jnp.zeros((H_PAD, H_PAD), jnp.float32).at[:HIDDEN_DIM, :HIDDEN_DIM].set(w2)
    b2p = jnp.zeros((H_PAD, 1), jnp.float32).at[:HIDDEN_DIM, 0].set(b2)
    # Layer-3 weight stored as a column (in_features, 1) so the kernel does a
    # lane-broadcast multiply + sublane reduce instead of an N=1 MXU matmul.
    w3p = jnp.zeros((H_PAD, 1), jnp.float32).at[:HIDDEN_DIM, 0].set(w3[0, :])
    b3p = jnp.reshape(b3, (1, 1)).astype(jnp.float32)
    return w1p, b1p, w2p, b2p, w3p, b3p


def reference_forward(x, w1, b1, w2, b2, w3, b3):
    h1 = jnp.maximum(x @ w1.T + b1, 0.0)
    h2 = jax.nn.sigmoid(h1 @ w2.T + b2)
    return jax.nn.sigmoid(h2 @ w3.T + b3)


if __name__ == "__main__":
    key = jax.random.PRNGKey(0)
    kx, kp = jax.random.split(key)

    params = init_params(kp)
    packed = pack_params(*params)

    # Small batch consistent with the (B, 2) module input.
    batch = 8
    x = jax.random.normal(kx, (batch, INPUT_DIM), jnp.float32)
    out = jax.block_until_ready(mlp_forward(x, *packed))
    ref = reference_forward(x, *params)
    assert out.shape == (batch, OUTPUT_DIM)
    assert jnp.allclose(out, ref, atol=1e-5, rtol=1e-5)

    # Exercise the pad / multi-tile grid path (batch not a multiple of 128).
    kx2 = jax.random.fold_in(kx, 1)
    batch2 = 300
    x2 = jax.random.normal(kx2, (batch2, INPUT_DIM), jnp.float32)
    out2 = jax.block_until_ready(mlp_forward(x2, *packed, block_batch=128))
    ref2 = reference_forward(x2, *params)
    assert out2.shape == (batch2, OUTPUT_DIM)
    assert jnp.allclose(out2, ref2, atol=1e-5, rtol=1e-5)

    # Exercise the automatic block-size heuristic (mid-size batch path).
    out3 = jax.block_until_ready(mlp_forward(x2, *packed))
    assert out3.shape == (batch2, OUTPUT_DIM)
    assert jnp.allclose(out3, ref2, atol=1e-5, rtol=1e-5)

    print("KERNEL_OK")
</pallas_src>

<mosaic_0001>
module attributes {stable_mosaic.version = 11 : i64} {
  func.func @mlp_kernel(%arg0: i32, %arg1: memref<2x128xf32, #tpu.memory_space<vmem>>, %arg2: memref<16x2xf32, #tpu.memory_space<vmem>>, %arg3: memref<16x1xf32, #tpu.memory_space<vmem>>, %arg4: memref<16x16xf32, #tpu.memory_space<vmem>>, %arg5: memref<16x1xf32, #tpu.memory_space<vmem>>, %arg6: memref<16x1xf32, #tpu.memory_space<vmem>>, %arg7: memref<1x1xf32, #tpu.memory_space<vmem>>, %arg8: memref<1x128xf32, #tpu.memory_space<vmem>>) attributes {dimension_semantics = [#tpu.dimension_semantics<parallel>], iteration_bounds = array<i64: 1>, scalar_prefetch = 0 : i64, scratch_operands = 0 : i64, tpu.core_type = #tpu.core_type<tc>, window_params = [{transform_indices = @transform_0, window_bounds = array<i64: 2, 128>}, {pipeline_mode = #tpu.pipeline_mode<synchronous>, transform_indices = @transform_1, window_bounds = array<i64: 16, 2>}, {pipeline_mode = #tpu.pipeline_mode<synchronous>, transform_indices = @transform_2, window_bounds = array<i64: 16, 1>}, {pipeline_mode = #tpu.pipeline_mode<synchronous>, transform_indices = @transform_3, window_bounds = array<i64: 16, 16>}, {pipeline_mode = #tpu.pipeline_mode<synchronous>, transform_indices = @transform_4, window_bounds = array<i64: 16, 1>}, {pipeline_mode = #tpu.pipeline_mode<synchronous>, transform_indices = @transform_5, window_bounds = array<i64: 16, 1>}, {pipeline_mode = #tpu.pipeline_mode<synchronous>, transform_indices = @transform_6, window_bounds = array<i64: 1, 1>}, {transform_indices = @transform_7, window_bounds = array<i64: 1, 128>}]} {
    %c0 = arith.constant 0 : index
    %c0_0 = arith.constant 0 : index
    %0 = vector.load %arg1[%c0, %c0_0] : memref<2x128xf32, #tpu.memory_space<vmem>>, vector<2x128xf32>
    %c0_1 = arith.constant 0 : index
    %c0_2 = arith.constant 0 : index
    %1 = vector.load %arg2[%c0_1, %c0_2] : memref<16x2xf32, #tpu.memory_space<vmem>>, vector<16x2xf32>
    %c0_3 = arith.constant 0 : index
    %c0_4 = arith.constant 0 : index
    %2 = vector.load %arg3[%c0_3, %c0_4] : memref<16x1xf32, #tpu.memory_space<vmem>>, vector<16x1xf32>
    %3 = vector.extract_strided_slice %1 {offsets = [0, 0], sizes = [16, 1], strides = [1, 1]} : vector<16x2xf32> to vector<16x1xf32>
    %4 = vector.extract_strided_slice %0 {offsets = [0, 0], sizes = [1, 128], strides = [1, 1]} : vector<2x128xf32> to vector<1x128xf32>
    %5 = vector.broadcast %3 : vector<16x1xf32> to vector<16x128xf32>
    %6 = vector.broadcast %4 : vector<1x128xf32> to vector<16x128xf32>
    %7 = arith.mulf %5, %6 : vector<16x128xf32>
    %8 = vector.broadcast %2 : vector<16x1xf32> to vector<16x128xf32>
    %9 = arith.addf %8, %7 : vector<16x128xf32>
    %10 = vector.extract_strided_slice %1 {offsets = [0, 1], sizes = [16, 1], strides = [1, 1]} : vector<16x2xf32> to vector<16x1xf32>
    %11 = vector.extract_strided_slice %0 {offsets = [1, 0], sizes = [1, 128], strides = [1, 1]} : vector<2x128xf32> to vector<1x128xf32>
    %12 = vector.broadcast %10 : vector<16x1xf32> to vector<16x128xf32>
    %13 = vector.broadcast %11 : vector<1x128xf32> to vector<16x128xf32>
    %14 = arith.mulf %12, %13 : vector<16x128xf32>
    %15 = arith.addf %9, %14 : vector<16x128xf32>
    %cst = arith.constant 0.000000e+00 : f32
    %16 = vector.broadcast %cst : f32 to vector<16x128xf32>
    %17 = arith.maximumf %15, %16 : vector<16x128xf32>
    %c0_5 = arith.constant 0 : index
    %c0_6 = arith.constant 0 : index
    %18 = vector.load %arg4[%c0_5, %c0_6] : memref<16x16xf32, #tpu.memory_space<vmem>>, vector<16x16xf32>
    %cst_7 = arith.constant dense<0.000000e+00> : vector<16x128xf32>
    %19 = tpu.matmul %18, %17, %cst_7 {dimension_numbers = #tpu.dot_dimension_numbers<[1], [0], [0], [1], [0, 0, 1, 1], [], []>, precision = #tpu.contract_precision<fp32>} : vector<16x16xf32>, vector<16x128xf32>, vector<16x128xf32> -> vector<16x128xf32>
    %c0_8 = arith.constant 0 : index
    %c0_9 = arith.constant 0 : index
    %20 = vector.load %arg5[%c0_8, %c0_9] : memref<16x1xf32, #tpu.memory_space<vmem>>, vector<16x1xf32>
    %21 = vector.broadcast %20 : vector<16x1xf32> to vector<16x128xf32>
    %22 = arith.addf %19, %21 : vector<16x128xf32>
    %cst_10 = arith.constant 5.000000e-01 : f32
    %23 = vector.broadcast %cst_10 : f32 to vector<16x128xf32>
    %24 = arith.mulf %23, %22 : vector<16x128xf32>
    %25 = math.tanh %24 : vector<16x128xf32>
    %cst_11 = arith.constant 1.000000e+00 : f32
    %26 = vector.broadcast %cst_11 : f32 to vector<16x128xf32>
    %27 = arith.addf %25, %26 : vector<16x128xf32>
    %cst_12 = arith.constant 5.000000e-01 : f32
    %28 = vector.broadcast %cst_12 : f32 to vector<16x128xf32>
    %29 = arith.mulf %28, %27 : vector<16x128xf32>
    %c0_13 = arith.constant 0 : index
    %c0_14 = arith.constant 0 : index
    %30 = vector.load %arg6[%c0_13, %c0_14] : memref<16x1xf32, #tpu.memory_space<vmem>>, vector<16x1xf32>
    %31 = vector.broadcast %30 : vector<16x1xf32> to vector<16x128xf32>
    %32 = arith.mulf %31, %29 : vector<16x128xf32>
    %cst_15 = arith.constant dense<0.000000e+00> : vector<128xf32>
    %33 = vector.multi_reduction <add>, %32, %cst_15 [0] : vector<16x128xf32> to vector<128xf32>
    %34 = vector.shape_cast %33 : vector<128xf32> to vector<1x128xf32>
    %c0_16 = arith.constant 0 : index
    %c0_17 = arith.constant 0 : index
    %35 = vector.load %arg7[%c0_16, %c0_17] : memref<1x1xf32, #tpu.memory_space<vmem>>, vector<1x1xf32>
    %36 = vector.broadcast %35 : vector<1x1xf32> to vector<1x128xf32>
    %37 = arith.addf %34, %36 : vector<1x128xf32>
    %cst_18 = arith.constant 5.000000e-01 : f32
    %38 = vector.broadcast %cst_18 : f32 to vector<1x128xf32>
    %39 = arith.mulf %38, %37 : vector<1x128xf32>
    %40 = math.tanh %39 : vector<1x128xf32>
    %cst_19 = arith.constant 1.000000e+00 : f32
    %41 = vector.broadcast %cst_19 : f32 to vector<1x128xf32>
    %42 = arith.addf %40, %41 : vector<1x128xf32>
    %cst_20 = arith.constant 5.000000e-01 : f32
    %43 = vector.broadcast %cst_20 : f32 to vector<1x128xf32>
    %44 = arith.mulf %43, %42 : vector<1x128xf32>
    %c0_21 = arith.constant 0 : index
    %c0_22 = arith.constant 0 : index
    %45 = vector.load %arg8[%c0_21, %c0_22] : memref<1x128xf32, #tpu.memory_space<vmem>>, vector<1x128xf32>
    tpu.vector_store %arg8[%c0_21, %c0_22], %44 {strides = array<i32>} : memref<1x128xf32, #tpu.memory_space<vmem>>, vector<1x128xf32>,
    return
  }
  func.func @transform_0(%arg0: i32) -> (i32, i32) {
    %c0_i32 = arith.constant 0 : i32
    %c0_i32_0 = arith.constant 0 : i32
    return %c0_i32, %arg0 : i32, i32
  }
  func.func @transform_1(%arg0: i32) -> (i32, i32) {
    %c0_i32 = arith.constant 0 : i32
    %c0_i32_0 = arith.constant 0 : i32
    %c0_i32_1 = arith.constant 0 : i32
    return %c0_i32, %c0_i32_0 : i32, i32
  }
  func.func @transform_2(%arg0: i32) -> (i32, i32) {
    %c0_i32 = arith.constant 0 : i32
    %c0_i32_0 = arith.constant 0 : i32
    %c0_i32_1 = arith.constant 0 : i32
    return %c0_i32, %c0_i32_0 : i32, i32
  }
  func.func @transform_3(%arg0: i32) -> (i32, i32) {
    %c0_i32 = arith.constant 0 : i32
    %c0_i32_0 = arith.constant 0 : i32
    %c0_i32_1 = arith.constant 0 : i32
    return %c0_i32, %c0_i32_0 : i32, i32
  }
  func.func @transform_4(%arg0: i32) -> (i32, i32) {
    %c0_i32 = arith.constant 0 : i32
    %c0_i32_0 = arith.constant 0 : i32
    %c0_i32_1 = arith.constant 0 : i32
    return %c0_i32, %c0_i32_0 : i32, i32
  }
  func.func @transform_5(%arg0: i32) -> (i32, i32) {
    %c0_i32 = arith.constant 0 : i32
    %c0_i32_0 = arith.constant 0 : i32
    %c0_i32_1 = arith.constant 0 : i32
    return %c0_i32, %c0_i32_0 : i32, i32
  }
  func.func @transform_6(%arg0: i32) -> (i32, i32) {
    %c0_i32 = arith.constant 0 : i32
    %c0_i32_0 = arith.constant 0 : i32
    %c0_i32_1 = arith.constant 0 : i32
    return %c0_i32, %c0_i32_0 : i32, i32
  }
  func.func @transform_7(%arg0: i32) -> (i32, i32) {
    %c0_i32 = arith.constant 0 : i32
    %c0_i32_0 = arith.constant 0 : i32
    return %c0_i32, %arg0 : i32, i32
  }
}

</mosaic_0001>

<llo_original>
// kernel: mlp_forward.1
$region0: #{mlp_forward.1}
  #allocation0 [shape = 'u32[]', space=smem, size = 0x4, offset = 0x4, fixed_abs, tag = 'smem constant byte address 0x4 - core index']
  #allocation1 [shape = 'u32[144,128]{1,0:T(1,128)}', space=vmem, size = 0x12000, scoped, tag = 'internal scratch']
  #allocation2 [shape = 'f32[1,1]{1,0:T(1,128)S(1)}', space=vmem, size = 0x200, scoped, tag = 'scoped memory for mlp_forward.1']
  %s0 = inlined_call_operand.vmem [shape: f32[2,128], index: 0, kind: input, shape index: {}]
  %s1 = inlined_call_operand.vmem [shape: f32[16,2], index: 1, kind: input, shape index: {}]
  %s2 = inlined_call_operand.vmem [shape: f32[16,1], index: 2, kind: input, shape index: {}]
  %s3 = inlined_call_operand.vmem [shape: f32[16,16], index: 3, kind: input, shape index: {}]
  %s4 = inlined_call_operand.vmem [shape: f32[16,1], index: 4, kind: input, shape index: {}]
  %s5 = inlined_call_operand.vmem [shape: f32[16,1], index: 5, kind: input, shape index: {}]
  %s6 = inlined_call_operand.<no memory space> [shape: f32[1,1], index: 6, kind: input, shape index: {}]
  %s7 = inlined_call_operand.vmem [shape: f32[1,128], index: 7, kind: output, shape index: {}]
  %s8 = sld [smem:[#allocation0]]
  $region38: #{mlp_forward.1} parent=0
    _
  %s10 = ssub.s32 1, %s8
  %s11 = scalar_select 0, %s10, %s8
  %v12 = vstv %s6
  %13 = vst [vmem:[#allocation2] sm:$0x1] %v12
  // Predicated region
  $region2: #{mlp_forward.1} parent=0 // pred_check
    _
  $region3: #{mlp_forward.1} parent=0 // pred_check_branch
    %15 = sbr.rel (0) target = $region5
  $region4: #{mlp_forward.1} parent=0 // pred_region
    _
  $region5: #{mlp_forward.1} parent=0 // pred_fallthru
    _
  // Predicated region
  $region6: #{mlp_forward.1} parent=0 // pred_check
    _
  $region7: #{mlp_forward.1} parent=0 // pred_check_branch
    %17 = sbr.rel (0) target = $region9
  $region8: #{mlp_forward.1} parent=0 // pred_region
    _
  $region9: #{mlp_forward.1} parent=0 // pred_fallthru
    _
  // Predicated region
  $region10: #{mlp_forward.1} parent=0 // pred_check
    _
  $region11: #{mlp_forward.1} parent=0 // pred_check_branch
    %19 = sbr.rel (0) target = $region13
  $region12: #{mlp_forward.1} parent=0 // pred_region
    _
  $region13: #{mlp_forward.1} parent=0 // pred_fallthru
    _
  // Predicated region
  $region14: #{mlp_forward.1} parent=0 // pred_check
    _
  $region15: #{mlp_forward.1} parent=0 // pred_check_branch
    %21 = sbr.rel (0) target = $region17
  $region16: #{mlp_forward.1} parent=0 // pred_region
    _
  $region17: #{mlp_forward.1} parent=0 // pred_fallthru
    _
  // Predicated region
  $region18: #{mlp_forward.1} parent=0 // pred_check
    _
  $region19: #{mlp_forward.1} parent=0 // pred_check_branch
    %23 = sbr.rel (0) target = $region21
  $region20: #{mlp_forward.1} parent=0 // pred_region
    _
  $region21: #{mlp_forward.1} parent=0 // pred_fallthru
    _
  // Predicated region
  $region22: #{mlp_forward.1} parent=0 // pred_check
    _
  $region23: #{mlp_forward.1} parent=0 // pred_check_branch
    %25 = sbr.rel (0) target = $region25
  $region24: #{mlp_forward.1} parent=0 // pred_region
    _
  $region25: #{mlp_forward.1} parent=0 // pred_fallthru
    _
  // Predicated region
  $region26: #{mlp_forward.1} parent=0 // pred_check
    _
  $region27: #{mlp_forward.1} parent=0 // pred_check_branch
    %27 = sbr.rel (0) target = $region29
  $region28: #{mlp_forward.1} parent=0 // pred_region
    _
  $region29: #{mlp_forward.1} parent=0 // pred_fallthru
    _
  %v28 = vld [vmem:[%s0] sm:$0x3]
  %v29 = vld [vmem:[%s1] sm:$0xff]
  %v30 = vld [vmem:[%s1 + $0x8] sm:$0xff]
  %v31 = vld [vmem:[%s2] sm:$0xff]
  %v32 = vld [vmem:[%s2 + $0x8] sm:$0xff]
  %34 = vset.pattern.permute.xlu0 0
  %35 = vperm.xlu0 %34, %v29
  %v36 = vpop.permute.xlu0 %35
  %39 = vset.pattern.permute.xlu0 0
  %40 = vperm.xlu0 %39, %v30
  %v41 = vpop.permute.xlu0 %40
  %v43 = vlaneseq
  %v44 = vshrl.u32 %v43, 7
  %v45 = vsub.s32 0, %v44
  %v46 = vrot.slane %v28, %v45
  %v47 = vmul.f32 %v36, %v46
  %v48 = vmul.f32 %v41, %v46
  %50 = vset.pattern.permute.xlu0 0
  %51 = vperm.xlu0 %50, %v31
  %v52 = vpop.permute.xlu0 %51
  %55 = vset.pattern.permute.xlu0 0
  %56 = vperm.xlu0 %55, %v32
  %v57 = vpop.permute.xlu0 %56
  %v59 = vadd.f32 %v52, %v47
  %v60 = vadd.f32 %v57, %v48
  %61 = vset.pattern.permute.xlu0 1
  %62 = vperm.xlu0 %61, %v29
  %v63 = vpop.permute.xlu0 %62
  %65 = vset.pattern.permute.xlu0 1
  %66 = vperm.xlu0 %65, %v30
  %v67 = vpop.permute.xlu0 %66
  %v69 = vlaneseq
  %v70 = vshrl.u32 %v69, 7
  %v71 = vsub.s32 1, %v70
  %v72 = vrot.slane %v28, %v71
  %v73 = vmul.f32 %v63, %v72
  %v74 = vmul.f32 %v67, %v72
  %v75 = vadd.f32 %v59, %v73
  %v76 = vadd.f32 %v60, %v74
  %v77 = vmax.f32 %v75, 0.0
  %v78 = vmax.f32 %v76, 0.0
  %v79 = vld [vmem:[%s3] sm:$0xff]
  %v80 = vld [vmem:[%s3 + $0x8] sm:$0xff]
  %v81 = vld [vmem:[%s4] sm:$0xff]
  %v82 = vld [vmem:[%s4 + $0x8] sm:$0xff]
  %84 = vset.pattern.permute.xlu0 0
  %85 = vperm.xlu0 %84, %v81
  %v86 = vpop.permute.xlu0 %85
  %89 = vset.pattern.permute.xlu0 0
  %90 = vperm.xlu0 %89, %v82
  %v91 = vpop.permute.xlu0 %90
  %vm93 = vcmask 130048
  %v95 = vsel %vm93, %v79, 0
  %v98 = vsel %vm93, %v80, 0
  %100 = vmatprep.subr.mxu0 0.0
  %v101 = vand.u32 %v77, 4294901760
  %102 = vmatpush1.msra.mxu0 %v101
  %103 = vmatprep.subr.mxu0 0.0
  %v104 = vand.u32 %v78, 4294901760
  %105 = vmatpush1.msra.mxu0 %v104
  %106 = vmatprep.subr.mxu0 0.0
  %107 = vmatpush1.msra.mxu0 0.0
  %108 = vmatprep.subr.mxu0 0.0
  %109 = vmatpush1.msra.mxu0 0.0
  %110 = vmatprep.subr.mxu0 0.0
  %111 = vmatpush1.msra.mxu0 0.0
  %112 = vmatprep.subr.mxu0 0.0
  %113 = vmatpush1.msra.mxu0 0.0
  %114 = vmatprep.subr.mxu0 0.0
  %115 = vmatpush1.msra.mxu0 0.0
  %116 = vmatprep.subr.mxu0 0.0
  %117 = vmatpush1.msra.mxu0 0.0
  %118 = vmatprep.subr.mxu0 0.0
  %119 = vmatpush1.msra.mxu0 0.0
  %120 = vmatprep.subr.mxu0 0.0
  %121 = vmatpush1.msra.mxu0 0.0
  %122 = vmatprep.subr.mxu0 0.0
  %123 = vmatpush1.msra.mxu0 0.0
  %124 = vmatprep.subr.mxu0 0.0
  %125 = vmatpush1.msra.mxu0 0.0
  %126 = vmatprep.subr.mxu0 0.0
  %127 = vmatpush1.msra.mxu0 0.0
  %128 = vmatprep.subr.mxu0 0.0
  %129 = vmatpush1.msra.mxu0 0.0
  %130 = vmatprep.subr.mxu0 0.0
  %131 = vmatpush1.msra.mxu0 0.0
  %132 = vmatprep.subr.mxu0 0.0
  %133 = vmatpush1.msra.mxu0 0.0
  %134 = vmatprep.subr.mxu0 0.0
  %135 = vmatpush1.msra.mxu0 0.0
  %136 = vmatprep.subr.mxu0 0.0
  %137 = vmatpush1.msra.mxu0 0.0
  %138 = vmatprep.subr.mxu0 0.0
  %139 = vmatpush1.msra.mxu0 0.0
  %140 = vmatprep.subr.mxu0 0.0
  %141 = vmatpush1.msra.mxu0 0.0
  %142 = vmatprep.subr.mxu0 0.0
  %143 = vmatpush1.msra.mxu0 0.0
  %144 = vmatprep.subr.mxu0 0.0
  %145 = vmatpush1.msra.mxu0 0.0
  %146 = vmatprep.subr.mxu0 0.0
  %147 = vmatpush1.msra.mxu0 0.0
  %148 = vmatprep.subr.mxu0 0.0
  %149 = vmatpush1.msra.mxu0 0.0
  %150 = vmatprep.subr.mxu0 0.0
  %151 = vmatpush1.msra.mxu0 0.0
  %152 = vmatprep.subr.mxu0 0.0
  %153 = vmatpush1.msra.mxu0 0.0
  %154 = vmatprep.subr.mxu0 0.0
  %155 = vmatpush1.msra.mxu0 0.0
  %156 = vmatprep.subr.mxu0 0.0
  %157 = vmatpush1.msra.mxu0 0.0
  %158 = vmatprep.subr.mxu0 0.0
  %159 = vmatpush1.msra.mxu0 0.0
  %160 = vmatprep.subr.mxu0 0.0
  %161 = vmatpush1.msra.mxu0 0.0
  %162 = vmatprep.subr.mxu0 0.0
  %163 = vmatpush1.msra.mxu0 0.0
  %164 = vmatprep.subr.mxu0 0.0
  %165 = vmatpush1.msra.mxu0 0.0
  %166 = vmatprep.mubr.f32.mxu0 0.0
  %v167 = vand.u32 %v95, 4294901760
  %v168 = vsub.f32 %v95, %v167
  %v169 = vand.u32 %v168, 4294901760
  %v170 = vsub.f32 %v168, %v169
  %v171 = vand.u32 %v170, 4294901760
  %172 = vmatmul.mubr.f32.gmra.mrb[0].mxu0 %v171
  %v173 = vpop.f32.mrb[0].mxu0
  %v174 = vadd.f32 %v86, %v173
  %v175 = vpop.f32.mrb[0].mxu0
  %176 = vmatprep.mubr.f32.mxu0 0.0
  %v177 = vand.u32 %v98, 4294901760
  %v178 = vsub.f32 %v98, %v177
  %v179 = vand.u32 %v178, 4294901760
  %v180 = vsub.f32 %v178, %v179
  %v181 = vand.u32 %v180, 4294901760
  %182 = vmatmul.mubr.f32.gmra.mrb[0].mxu0 %v181
  %v183 = vpop.f32.mrb[0].mxu0
  %v184 = vadd.f32 %v91, %v183
  %v185 = vpop.f32.mrb[0].mxu0
  %186 = vdwg.mxu0
  %187 = vmatprep.subr.mxu0 0.0
  %v188 = vand.u32 %v77, 4294901760
  %v189 = vsub.f32 %v77, %v188
  %v190 = vand.u32 %v189, 4294901760
  %v191 = vsub.f32 %v189, %v190
  %v192 = vand.u32 %v191, 4294901760
  %193 = vmatpush1.msra.mxu0 %v192
  %194 = vmatprep.subr.mxu0 0.0
  %v195 = vand.u32 %v78, 4294901760
  %v196 = vsub.f32 %v78, %v195
  %v197 = vand.u32 %v196, 4294901760
  %v198 = vsub.f32 %v196, %v197
  %v199 = vand.u32 %v198, 4294901760
  %200 = vmatpush1.msra.mxu0 %v199
  %201 = vmatprep.subr.mxu0 0.0
  %202 = vmatpush1.msra.mxu0 0.0
  %203 = vmatprep.subr.mxu0 0.0
  %204 = vmatpush1.msra.mxu0 0.0
  %205 = vmatprep.subr.mxu0 0.0
  %206 = vmatpush1.msra.mxu0 0.0
  %207 = vmatprep.subr.mxu0 0.0
  %208 = vmatpush1.msra.mxu0 0.0
  %209 = vmatprep.subr.mxu0 0.0
  %210 = vmatpush1.msra.mxu0 0.0
  %211 = vmatprep.subr.mxu0 0.0
  %212 = vmatpush1.msra.mxu0 0.0
  %213 = vmatprep.subr.mxu0 0.0
  %214 = vmatpush1.msra.mxu0 0.0
  %215 = vmatprep.subr.mxu0 0.0
  %216 = vmatpush1.msra.mxu0 0.0
  %217 = vmatprep.subr.mxu0 0.0
  %218 = vmatpush1.msra.mxu0 0.0
  %219 = vmatprep.subr.mxu0 0.0
  %220 = vmatpush1.msra.mxu0 0.0
  %221 = vmatprep.subr.mxu0 0.0
  %222 = vmatpush1.msra.mxu0 0.0
  %223 = vmatprep.subr.mxu0 0.0
  %224 = vmatpush1.msra.mxu0 0.0
  %225 = vmatprep.subr.mxu0 0.0
  %226 = vmatpush1.msra.mxu0 0.0
  %227 = vmatprep.subr.mxu0 0.0
  %228 = vmatpush1.msra.mxu0 0.0
  %229 = vmatprep.subr.mxu0 0.0
  %230 = vmatpush1.msra.mxu0 0.0
  %231 = vmatprep.subr.mxu0 0.0
  %232 = vmatpush1.msra.mxu0 0.0
  %233 = vmatprep.subr.mxu0 0.0
  %234 = vmatpush1.msra.mxu0 0.0
  %235 = vmatprep.subr.mxu0 0.0
  %236 = vmatpush1.msra.mxu0 0.0
  %237 = vmatprep.subr.mxu0 0.0
  %238 = vmatpush1.msra.mxu0 0.0
  %239 = vmatprep.subr.mxu0 0.0
  %240 = vmatpush1.msra.mxu0 0.0
  %241 = vmatprep.subr.mxu0 0.0
  %242 = vmatpush1.msra.mxu0 0.0
  %243 = vmatprep.subr.mxu0 0.0
  %244 = vmatpush1.msra.mxu0 0.0
  %245 = vmatprep.subr.mxu0 0.0
  %246 = vmatpush1.msra.mxu0 0.0
  %247 = vmatprep.subr.mxu0 0.0
  %248 = vmatpush1.msra.mxu0 0.0
  %249 = vmatprep.subr.mxu0 0.0
  %250 = vmatpush1.msra.mxu0 0.0
  %251 = vmatprep.subr.mxu0 0.0
  %252 = vmatpush1.msra.mxu0 0.0
  %253 = vmatprep.subr.mxu0 0.0
  %254 = vmatpush1.msra.mxu0 0.0
  %255 = vmatprep.subr.mxu0 0.0
  %256 = vmatpush1.msra.mxu0 0.0
  %257 = vmatprep.subr.mxu0 0.0
  %258 = vmatpush1.msra.mxu0 0.0
  %259 = vmatprep.subr.mxu0 0.0
  %260 = vmatpush1.msra.mxu0 0.0
  %261 = vmatprep.mubr.f32.mxu0 0.0
  %v262 = vand.u32 %v95, 4294901760
  %263 = vmatmul.mubr.f32.gmra.mrb[0].mxu0 %v262
  %v264 = vpop.f32.mrb[0].mxu0
  %v265 = vadd.f32 %v174, %v264
  %v266 = vpop.f32.mrb[0].mxu0
  %267 = vmatprep.mubr.f32.mxu0 0.0
  %v268 = vand.u32 %v98, 4294901760
  %269 = vmatmul.mubr.f32.gmra.mrb[0].mxu0 %v268
  %v270 = vpop.f32.mrb[0].mxu0
  %v271 = vadd.f32 %v184, %v270
  %v272 = vpop.f32.mrb[0].mxu0
  %273 = vdwg.mxu0
  %274 = vmatprep.subr.mxu0 0.0
  %v275 = vand.u32 %v77, 4294901760
  %v276 = vsub.f32 %v77, %v275
  %277 = vmatpush1.msra.mxu0 %v276
  %278 = vmatprep.subr.mxu0 0.0
  %v279 = vand.u32 %v78, 4294901760
  %v280 = vsub.f32 %v78, %v279
  %281 = vmatpush1.msra.mxu0 %v280
  %282 = vmatprep.subr.mxu0 0.0
  %283 = vmatpush1.msra.mxu0 0.0
  %284 = vmatprep.subr.mxu0 0.0
  %285 = vmatpush1.msra.mxu0 0.0
  %286 = vmatprep.subr.mxu0 0.0
  %287 = vmatpush1.msra.mxu0 0.0
  %288 = vmatprep.subr.mxu0 0.0
  %289 = vmatpush1.msra.mxu0 0.0
  %290 = vmatprep.subr.mxu0 0.0
  %291 = vmatpush1.msra.mxu0 0.0
  %292 = vmatprep.subr.mxu0 0.0
  %293 = vmatpush1.msra.mxu0 0.0
  %294 = vmatprep.subr.mxu0 0.0
  %295 = vmatpush1.msra.mxu0 0.0
  %296 = vmatprep.subr.mxu0 0.0
  %297 = vmatpush1.msra.mxu0 0.0
  %298 = vmatprep.subr.mxu0 0.0
  %299 = vmatpush1.msra.mxu0 0.0
  %300 = vmatprep.subr.mxu0 0.0
  %301 = vmatpush1.msra.mxu0 0.0
  %302 = vmatprep.subr.mxu0 0.0
  %303 = vmatpush1.msra.mxu0 0.0
  %304 = vmatprep.subr.mxu0 0.0
  %305 = vmatpush1.msra.mxu0 0.0
  %306 = vmatprep.subr.mxu0 0.0
  %307 = vmatpush1.msra.mxu0 0.0
  %308 = vmatprep.subr.mxu0 0.0
  %309 = vmatpush1.msra.mxu0 0.0
  %310 = vmatprep.subr.mxu0 0.0
  %311 = vmatpush1.msra.mxu0 0.0
  %312 = vmatprep.subr.mxu0 0.0
  %313 = vmatpush1.msra.mxu0 0.0
  %314 = vmatprep.subr.mxu0 0.0
  %315 = vmatpush1.msra.mxu0 0.0
  %316 = vmatprep.subr.mxu0 0.0
  %317 = vmatpush1.msra.mxu0 0.0
  %318 = vmatprep.subr.mxu0 0.0
  %319 = vmatpush1.msra.mxu0 0.0
  %320 = vmatprep.subr.mxu0 0.0
  %321 = vmatpush1.msra.mxu0 0.0
  %322 = vmatprep.subr.mxu0 0.0
  %323 = vmatpush1.msra.mxu0 0.0
  %324 = vmatprep.subr.mxu0 0.0
  %325 = vmatpush1.msra.mxu0 0.0
  %326 = vmatprep.subr.mxu0 0.0
  %327 = vmatpush1.msra.mxu0 0.0
  %328 = vmatprep.subr.mxu0 0.0
  %329 = vmatpush1.msra.mxu0 0.0
  %330 = vmatprep.subr.mxu0 0.0
  %331 = vmatpush1.msra.mxu0 0.0
  %332 = vmatprep.subr.mxu0 0.0
  %333 = vmatpush1.msra.mxu0 0.0
  %334 = vmatprep.subr.mxu0 0.0
  %335 = vmatpush1.msra.mxu0 0.0
  %336 = vmatprep.subr.mxu0 0.0
  %337 = vmatpush1.msra.mxu0 0.0
  %338 = vmatprep.subr.mxu0 0.0
  %339 = vmatpush1.msra.mxu0 0.0
  %340 = vmatprep.subr.mxu0 0.0
  %341 = vmatpush1.msra.mxu0 0.0
  %342 = vmatprep.mubr.f32.mxu0 0.0
  %v343 = vand.u32 %v95, 4294901760
  %v344 = vsub.f32 %v95, %v343
  %345 = vmatmul.mubr.f32.gmra.mrb[0].mxu0 %v344
  %v346 = vpop.f32.mrb[0].mxu0
  %v347 = vadd.f32 %v265, %v346
  %v348 = vpop.f32.mrb[0].mxu0
  %349 = vmatprep.mubr.f32.mxu0 0.0
  %v350 = vand.u32 %v98, 4294901760
  %v351 = vsub.f32 %v98, %v350
  %352 = vmatmul.mubr.f32.gmra.mrb[0].mxu0 %v351
  %v353 = vpop.f32.mrb[0].mxu0
  %v354 = vadd.f32 %v271, %v353
  %v355 = vpop.f32.mrb[0].mxu0
  %356 = vdwg.mxu0
  %357 = vmatprep.subr.mxu0 0.0
  %v358 = vand.u32 %v77, 4294901760
  %359 = vmatpush1.msra.mxu0 %v358
  %360 = vmatprep.subr.mxu0 0.0
  %v361 = vand.u32 %v78, 4294901760
  %362 = vmatpush1.msra.mxu0 %v361
  %363 = vmatprep.subr.mxu0 0.0
  %364 = vmatpush1.msra.mxu0 0.0
  %365 = vmatprep.subr.mxu0 0.0
  %366 = vmatpush1.msra.mxu0 0.0
  %367 = vmatprep.subr.mxu0 0.0
  %368 = vmatpush1.msra.mxu0 0.0
  %369 = vmatprep.subr.mxu0 0.0
  %370 = vmatpush1.msra.mxu0 0.0
  %371 = vmatprep.subr.mxu0 0.0
  %372 = vmatpush1.msra.mxu0 0.0
  %373 = vmatprep.subr.mxu0 0.0
  %374 = vmatpush1.msra.mxu0 0.0
  %375 = vmatprep.subr.mxu0 0.0
  %376 = vmatpush1.msra.mxu0 0.0
  %377 = vmatprep.subr.mxu0 0.0
  %378 = vmatpush1.msra.mxu0 0.0
  %379 = vmatprep.subr.mxu0 0.0
  %380 = vmatpush1.msra.mxu0 0.0
  %381 = vmatprep.subr.mxu0 0.0
  %382 = vmatpush1.msra.mxu0 0.0
  %383 = vmatprep.subr.mxu0 0.0
  %384 = vmatpush1.msra.mxu0 0.0
  %385 = vmatprep.subr.mxu0 0.0
  %386 = vmatpush1.msra.mxu0 0.0
  %387 = vmatprep.subr.mxu0 0.0
  %388 = vmatpush1.msra.mxu0 0.0
  %389 = vmatprep.subr.mxu0 0.0
  %390 = vmatpush1.msra.mxu0 0.0
  %391 = vmatprep.subr.mxu0 0.0
  %392 = vmatpush1.msra.mxu0 0.0
  %393 = vmatprep.subr.mxu0 0.0
  %394 = vmatpush1.msra.mxu0 0.0
  %395 = vmatprep.subr.mxu0 0.0
  %396 = vmatpush1.msra.mxu0 0.0
  %397 = vmatprep.subr.mxu0 0.0
  %398 = vmatpush1.msra.mxu0 0.0
  %399 = vmatprep.subr.mxu0 0.0
  %400 = vmatpush1.msra.mxu0 0.0
  %401 = vmatprep.subr.mxu0 0.0
  %402 = vmatpush1.msra.mxu0 0.0
  %403 = vmatprep.subr.mxu0 0.0
  %404 = vmatpush1.msra.mxu0 0.0
  %405 = vmatprep.subr.mxu0 0.0
  %406 = vmatpush1.msra.mxu0 0.0
  %407 = vmatprep.subr.mxu0 0.0
  %408 = vmatpush1.msra.mxu0 0.0
  %409 = vmatprep.subr.mxu0 0.0
  %410 = vmatpush1.msra.mxu0 0.0
  %411 = vmatprep.subr.mxu0 0.0
  %412 = vmatpush1.msra.mxu0 0.0
  %413 = vmatprep.subr.mxu0 0.0
  %414 = vmatpush1.msra.mxu0 0.0
  %415 = vmatprep.subr.mxu0 0.0
  %416 = vmatpush1.msra.mxu0 0.0
  %417 = vmatprep.subr.mxu0 0.0
  %418 = vmatpush1.msra.mxu0 0.0
  %419 = vmatprep.subr.mxu0 0.0
  %420 = vmatpush1.msra.mxu0 0.0
  %421 = vmatprep.subr.mxu0 0.0
  %422 = vmatpush1.msra.mxu0 0.0
  %423 = vmatprep.mubr.f32.mxu0 0.0
  %v424 = vand.u32 %v95, 4294901760
  %v425 = vsub.f32 %v95, %v424
  %v426 = vand.u32 %v425, 4294901760
  %427 = vmatmul.mubr.f32.gmra.mrb[0].mxu0 %v426
  %v428 = vpop.f32.mrb[0].mxu0
  %v429 = vadd.f32 %v347, %v428
  %v430 = vpop.f32.mrb[0].mxu0
  %431 = vmatprep.mubr.f32.mxu0 0.0
  %v432 = vand.u32 %v98, 4294901760
  %v433 = vsub.f32 %v98, %v432
  %v434 = vand.u32 %v433, 4294901760
  %435 = vmatmul.mubr.f32.gmra.mrb[0].mxu0 %v434
  %v436 = vpop.f32.mrb[0].mxu0
  %v437 = vadd.f32 %v354, %v436
  %v438 = vpop.f32.mrb[0].mxu0
  %439 = vdwg.mxu0
  %440 = vmatprep.subr.mxu0 0.0
  %v441 = vand.u32 %v77, 4294901760
  %v442 = vsub.f32 %v77, %v441
  %v443 = vand.u32 %v442, 4294901760
  %444 = vmatpush1.msra.mxu0 %v443
  %445 = vmatprep.subr.mxu0 0.0
  %v446 = vand.u32 %v78, 4294901760
  %v447 = vsub.f32 %v78, %v446
  %v448 = vand.u32 %v447, 4294901760
  %449 = vmatpush1.msra.mxu0 %v448
  %450 = vmatprep.subr.mxu0 0.0
  %451 = vmatpush1.msra.mxu0 0.0
  %452 = vmatprep.subr.mxu0 0.0
  %453 = vmatpush1.msra.mxu0 0.0
  %454 = vmatprep.subr.mxu0 0.0
  %455 = vmatpush1.msra.mxu0 0.0
  %456 = vmatprep.subr.mxu0 0.0
  %457 = vmatpush1.msra.mxu0 0.0
  %458 = vmatprep.subr.mxu0 0.0
  %459 = vmatpush1.msra.mxu0 0.0
  %460 = vmatprep.subr.mxu0 0.0
  %461 = vmatpush1.msra.mxu0 0.0
  %462 = vmatprep.subr.mxu0 0.0
  %463 = vmatpush1.msra.mxu0 0.0
  %464 = vmatprep.subr.mxu0 0.0
  %465 = vmatpush1.msra.mxu0 0.0
  %466 = vmatprep.subr.mxu0 0.0
  %467 = vmatpush1.msra.mxu0 0.0
  %468 = vmatprep.subr.mxu0 0.0
  %469 = vmatpush1.msra.mxu0 0.0
  %470 = vmatprep.subr.mxu0 0.0
  %471 = vmatpush1.msra.mxu0 0.0
  %472 = vmatprep.subr.mxu0 0.0
  %473 = vmatpush1.msra.mxu0 0.0
  %474 = vmatprep.subr.mxu0 0.0
  %475 = vmatpush1.msra.mxu0 0.0
  %476 = vmatprep.subr.mxu0 0.0
  %477 = vmatpush1.msra.mxu0 0.0
  %478 = vmatprep.subr.mxu0 0.0
  %479 = vmatpush1.msra.mxu0 0.0
  %480 = vmatprep.subr.mxu0 0.0
  %481 = vmatpush1.msra.mxu0 0.0
  %482 = vmatprep.subr.mxu0 0.0
  %483 = vmatpush1.msra.mxu0 0.0
  %484 = vmatprep.subr.mxu0 0.0
  %485 = vmatpush1.msra.mxu0 0.0
  %486 = vmatprep.subr.mxu0 0.0
  %487 = vmatpush1.msra.mxu0 0.0
  %488 = vmatprep.subr.mxu0 0.0
  %489 = vmatpush1.msra.mxu0 0.0
  %490 = vmatprep.subr.mxu0 0.0
  %491 = vmatpush1.msra.mxu0 0.0
  %492 = vmatprep.subr.mxu0 0.0
  %493 = vmatpush1.msra.mxu0 0.0
  %494 = vmatprep.subr.mxu0 0.0
  %495 = vmatpush1.msra.mxu0 0.0
  %496 = vmatprep.subr.mxu0 0.0
  %497 = vmatpush1.msra.mxu0 0.0
  %498 = vmatprep.subr.mxu0 0.0
  %499 = vmatpush1.msra.mxu0 0.0
  %500 = vmatprep.subr.mxu0 0.0
  %501 = vmatpush1.msra.mxu0 0.0
  %502 = vmatprep.subr.mxu0 0.0
  %503 = vmatpush1.msra.mxu0 0.0
  %504 = vmatprep.subr.mxu0 0.0
  %505 = vmatpush1.msra.mxu0 0.0
  %506 = vmatprep.subr.mxu0 0.0
  %507 = vmatpush1.msra.mxu0 0.0
  %508 = vmatprep.subr.mxu0 0.0
  %509 = vmatpush1.msra.mxu0 0.0
  %510 = vmatprep.mubr.f32.mxu0 0.0
  %v511 = vand.u32 %v95, 4294901760
  %512 = vmatmul.mubr.f32.gmra.mrb[0].mxu0 %v511
  %v513 = vpop.f32.mrb[0].mxu0
  %v514 = vadd.f32 %v429, %v513
  %v515 = vpop.f32.mrb[0].mxu0
  %516 = vmatprep.mubr.f32.mxu0 0.0
  %v517 = vand.u32 %v98, 4294901760
  %518 = vmatmul.mubr.f32.gmra.mrb[0].mxu0 %v517
  %v519 = vpop.f32.mrb[0].mxu0
  %v520 = vadd.f32 %v437, %v519
  %v521 = vpop.f32.mrb[0].mxu0
  %522 = vdwg.mxu0
  %523 = vmatprep.subr.mxu0 0.0
  %v524 = vand.u32 %v77, 4294901760
  %525 = vmatpush1.msra.mxu0 %v524
  %526 = vmatprep.subr.mxu0 0.0
  %v527 = vand.u32 %v78, 4294901760
  %528 = vmatpush1.msra.mxu0 %v527
  %529 = vmatprep.subr.mxu0 0.0
  %530 = vmatpush1.msra.mxu0 0.0
  %531 = vmatprep.subr.mxu0 0.0
  %532 = vmatpush1.msra.mxu0 0.0
  %533 = vmatprep.subr.mxu0 0.0
  %534 = vmatpush1.msra.mxu0 0.0
  %535 = vmatprep.subr.mxu0 0.0
  %536 = vmatpush1.msra.mxu0 0.0
  %537 = vmatprep.subr.mxu0 0.0
  %538 = vmatpush1.msra.mxu0 0.0
  %539 = vmatprep.subr.mxu0 0.0
  %540 = vmatpush1.msra.mxu0 0.0
  %541 = vmatprep.subr.mxu0 0.0
  %542 = vmatpush1.msra.mxu0 0.0
  %543 = vmatprep.subr.mxu0 0.0
  %544 = vmatpush1.msra.mxu0 0.0
  %545 = vmatprep.subr.mxu0 0.0
  %546 = vmatpush1.msra.mxu0 0.0
  %547 = vmatprep.subr.mxu0 0.0
  %548 = vmatpush1.msra.mxu0 0.0
  %549 = vmatprep.subr.mxu0 0.0
  %550 = vmatpush1.msra.mxu0 0.0
  %551 = vmatprep.subr.mxu0 0.0
  %552 = vmatpush1.msra.mxu0 0.0
  %553 = vmatprep.subr.mxu0 0.0
  %554 = vmatpush1.msra.mxu0 0.0
  %555 = vmatprep.subr.mxu0 0.0
  %556 = vmatpush1.msra.mxu0 0.0
  %557 = vmatprep.subr.mxu0 0.0
  %558 = vmatpush1.msra.mxu0 0.0
  %559 = vmatprep.subr.mxu0 0.0
  %560 = vmatpush1.msra.mxu0 0.0
  %561 = vmatprep.subr.mxu0 0.0
  %562 = vmatpush1.msra.mxu0 0.0
  %563 = vmatprep.subr.mxu0 0.0
  %564 = vmatpush1.msra.mxu0 0.0
  %565 = vmatprep.subr.mxu0 0.0
  %566 = vmatpush1.msra.mxu0 0.0
  %567 = vmatprep.subr.mxu0 0.0
  %568 = vmatpush1.msra.mxu0 0.0
  %569 = vmatprep.subr.mxu0 0.0
  %570 = vmatpush1.msra.mxu0 0.0
  %571 = vmatprep.subr.mxu0 0.0
  %572 = vmatpush1.msra.mxu0 0.0
  %573 = vmatprep.subr.mxu0 0.0
  %574 = vmatpush1.msra.mxu0 0.0
  %575 = vmatprep.subr.mxu0 0.0
  %576 = vmatpush1.msra.mxu0 0.0
  %577 = vmatprep.subr.mxu0 0.0
  %578 = vmatpush1.msra.mxu0 0.0
  %579 = vmatprep.subr.mxu0 0.0
  %580 = vmatpush1.msra.mxu0 0.0
  %581 = vmatprep.subr.mxu0 0.0
  %582 = vmatpush1.msra.mxu0 0.0
  %583 = vmatprep.subr.mxu0 0.0
  %584 = vmatpush1.msra.mxu0 0.0
  %585 = vmatprep.subr.mxu0 0.0
  %586 = vmatpush1.msra.mxu0 0.0
  %587 = vmatprep.subr.mxu0 0.0
  %588 = vmatpush1.msra.mxu0 0.0
  %589 = vmatprep.mubr.f32.mxu0 0.0
  %v590 = vand.u32 %v95, 4294901760
  %591 = vmatmul.mubr.f32.gmra.mrb[0].mxu0 %v590
  %v592 = vpop.f32.mrb[0].mxu0
  %v593 = vadd.f32 %v514, %v592
  %v594 = vpop.f32.mrb[0].mxu0
  %595 = vmatprep.mubr.f32.mxu0 0.0
  %v596 = vand.u32 %v98, 4294901760
  %597 = vmatmul.mubr.f32.gmra.mrb[0].mxu0 %v596
  %v598 = vpop.f32.mrb[0].mxu0
  %v599 = vadd.f32 %v520, %v598
  %v600 = vpop.f32.mrb[0].mxu0
  %601 = vdwg.mxu0
  %v602 = vmul.f32 %v593, 0.5
  %v603 = vmul.f32 %v599, 0.5
  %v604 = vtanh.pop %v602
  %v605 = vtanh.pop %v603
  %v606 = vadd.f32 %v604, 1.0
  %v607 = vadd.f32 %v605, 1.0
  %v608 = vmul.f32 %v606, 0.5
  %v609 = vmul.f32 %v607, 0.5
  %v610 = vld [vmem:[%s5] sm:$0xff]
  %v611 = vld [vmem:[%s5 + $0x8] sm:$0xff]
  %613 = vset.pattern.permute.xlu0 0
  %614 = vperm.xlu0 %613, %v610
  %v615 = vpop.permute.xlu0 %614
  %618 = vset.pattern.permute.xlu0 0
  %619 = vperm.xlu0 %618, %v611
  %v620 = vpop.permute.xlu0 %619
  %v622 = vmul.f32 %v615, %v608
  %v623 = vmul.f32 %v620, %v609
  %v624 = vadd.f32 %v622, %v623
  %v625 = vrot.slane %v624, 4
  %v626 = vadd.f32 %v624, %v625
  %v627 = vrot.slane %v626, 2
  %v628 = vadd.f32 %v626, %v627
  %v629 = vrot.slane %v628, 1
  %v630 = vadd.f32 %v628, %v629
  %v631 = vld [vmem:[#allocation2] sm:$0x1]
  %633 = vset.pattern.permute.xlu0 0
  %634 = vperm.xlu0 %633, %v631
  %v635 = vpop.permute.xlu0 %634
  %v637 = vlaneseq
  %v638 = vshrl.u32 %v637, 7
  %v639 = vsub.s32 0, %v638
  %v640 = vrot.slane %v635, %v639
  %v641 = vadd.f32 %v630, %v640
  %v642 = vmul.f32 %v641, 0.5
  %v643 = vtanh.pop %v642
  %v644 = vadd.f32 %v643, 1.0
  %v645 = vmul.f32 %v644, 0.5
  %646 = vst [vmem:[%s7] sm:$0x1] %v645
  // Predicated region
  $region30: #{mlp_forward.1} parent=0 // pred_check
    _
  $region31: #{mlp_forward.1} parent=0 // pred_check_branch
    %648 = sbr.rel (0) target = $region33
  $region32: #{mlp_forward.1} parent=0 // pred_region
    _
  $region33: #{mlp_forward.1} parent=0 // pred_fallthru
    _
  // Predicated region
  $region34: #{mlp_forward.1} parent=0 // pred_check
    _
  $region35: #{mlp_forward.1} parent=0 // pred_check_branch
    %650 = sbr.rel (0) target = $region37
  $region36: #{mlp_forward.1} parent=0 // pred_region
    _
  $region37: #{mlp_forward.1} parent=0 // pred_fallthru
    _

</llo_original>
